<compile_context>
chip_gen: v7x
topology: tpu7x:2x2x1
jax: 0.10.0
libtpu: 0.0.40
codegen_flags: <defaults>
</compile_context>

<pallas_src>
import functools

import jax
import jax.numpy as jnp
from jax.experimental import pallas as pl
from jax.experimental.pallas import tpu as pltpu


_LANE_BLOCK = 65536                 # max lanes per grid step (sweet spot 16K-64K)
_VMEM_LIMIT = 32 * 1024 * 1024      # safe on v5e/v6e/v7x; blocks are ~MiB-scale


def _round_up(x, m):
    return ((x + m - 1) // m) * m


def _ar_kernel(a_ref, b_ref, seed_ref, out_ref):
    """out[h, l] = sum_k A[h, k] * seed[k, l] + b[h].

    a_ref: (H, p)  b_ref: (H, 1)  seed_ref: (p, lane)  out_ref: (H, lane).
    p is tiny, so the contraction is p VPU broadcast-FMAs; the kernel is
    HBM-bound so no MXU is needed.
    """
    H, lane = out_ref.shape
    p = a_ref.shape[1]
    a = a_ref[...]
    seed = seed_ref[...]
    acc = jnp.broadcast_to(b_ref[...], (H, lane))
    for k in range(p):                                   # static, short
        acc = acc + a[:, k:k + 1] * seed[k:k + 1, :]
    out_ref[...] = acc


def _unroll_coefficients(weight, c, p, output_length):
    """Return A [H, p], b [H, 1] with  y_h = sum_k A[h, k] * seed[k] + b[h]."""
    w = weight.reshape(p).astype(jnp.float32)            # oldest -> newest
    bias = c.reshape(()).astype(jnp.float32)

    def step(carry, _):
        coef, cbias = carry                              # (p, p), (p,)
        new_coef = w @ coef                              # (p,)
        new_bias = jnp.dot(w, cbias) + bias              # ()
        coef = jnp.concatenate([coef[1:], new_coef[None, :]], axis=0)
        cbias = jnp.concatenate([cbias[1:], new_bias[None]], axis=0)
        return (coef, cbias), (new_coef, new_bias)

    init = (jnp.eye(p, dtype=jnp.float32), jnp.zeros((p,), jnp.float32))
    _, (A, bvals) = jax.lax.scan(step, init, None, length=output_length)
    return A, bvals[:, None]                             # (H, p), (H, 1)


def _compiler_params(semantics):
    return pltpu.CompilerParams(dimension_semantics=semantics,
                                vmem_limit_bytes=_VMEM_LIMIT)


@functools.partial(jax.jit, static_argnames=("p", "output_length"))
def autoregressive_forward(history_data, weight, c, *, p, output_length):
    """history_data: [B, L, N, C]; weight: [p, 1]; c: [1] -> [B, H, N, C]."""
    B, L, N, C = history_data.shape
    assert L >= p, "Error: window size > input data length"
    H = output_length
    NC = N * C

    # Tiny, weight-only precompute that removes the serial dependency.
    A, b = _unroll_coefficients(weight, c, p, H)         # (H, p), (H, 1)

    if NC >= 128:
        # Transpose-free B-major path: seed [B, p, NC] -> out [B, H, NC].
        seed = history_data[:, L - p:, :, :].astype(jnp.float32).reshape(B, p, NC)
        lane_blk = min(_LANE_BLOCK, (NC // 128) * 128)
        n_lane = pl.cdiv(NC, lane_blk)
        out = pl.pallas_call(
            _ar_kernel,
            out_shape=jax.ShapeDtypeStruct((B, H, NC), jnp.float32),
            grid_spec=pltpu.PrefetchScalarGridSpec(
                num_scalar_prefetch=0,
                grid=(B, n_lane),
                in_specs=[
                    pl.BlockSpec((H, p), lambda bi, j: (0, 0)),        # A
                    pl.BlockSpec((H, 1), lambda bi, j: (0, 0)),        # bias
                    pl.BlockSpec((None, p, lane_blk),                  # seed
                                 lambda bi, j: (bi, 0, j)),
                ],
                out_specs=pl.BlockSpec((None, H, lane_blk),
                                       lambda bi, j: (bi, 0, j)),
            ),
            compiler_params=_compiler_params(("parallel", "parallel")),
            cost_estimate=pl.CostEstimate(
                flops=2 * H * p * B * NC,
                transcendentals=0,
                bytes_accessed=4 * ((p + H) * B * NC + H * (p + 1)),
            ),
        )(A, b, seed)
        return out.reshape(B, H, N, C)

    # Lane-sparse N*C: flatten B*N*C onto lanes (the transpose touches only
    # p rows of data, so it is cheap in this regime).
    F = B * NC
    seed = history_data[:, L - p:, :, :].astype(jnp.float32)       # [B, p, N, C]
    seed = jnp.transpose(seed, (1, 0, 2, 3)).reshape(p, F)         # [p, F]

    if F <= 128:
        lane_blk = F                                     # single full-extent block
    else:
        # Keep >= 2 blocks so v7x's two TensorCores both get work.
        lane_blk = min(_LANE_BLOCK, _round_up(-(-F // 2), 128))
    n_lane = pl.cdiv(F, lane_blk)

    out = pl.pallas_call(
        _ar_kernel,
        out_shape=jax.ShapeDtypeStruct((H, F), jnp.float32),
        grid_spec=pltpu.PrefetchScalarGridSpec(
            num_scalar_prefetch=0,
            grid=(n_lane,),
            in_specs=[
                pl.BlockSpec((H, p), lambda j: (0, 0)),              # A
                pl.BlockSpec((H, 1), lambda j: (0, 0)),              # bias
                pl.BlockSpec((p, lane_blk), lambda j: (0, j)),       # seed
            ],
            out_specs=pl.BlockSpec((H, lane_blk), lambda j: (0, j)),
        ),
        compiler_params=_compiler_params(("parallel",)),
        cost_estimate=pl.CostEstimate(
            flops=2 * H * p * F,
            transcendentals=0,
            bytes_accessed=4 * ((p + H) * F + H * (p + 1)),
        ),
    )(A, b, seed)

    out = out.reshape(H, B, N, C)
    return jnp.transpose(out, (1, 0, 2, 3))                         # [B, H, N, C]


def _reference(history_data, weight, c, p, output_length):
    """Pure-JAX reference mirroring the PyTorch loop."""
    data_full = history_data
    for _ in range(output_length):
        window = data_full[:, -p:, :, :]                             # [B, p, N, C]
        wavg = jnp.einsum("bpnc,p->bnc", window, weight[:, 0])
        wavg = wavg[:, None, :, :] + c[0]
        data_full = jnp.concatenate([data_full, wavg], axis=1)
    return data_full[:, -output_length:, :, :]


if __name__ == "__main__":
    # Module hyper-parameters (small, consistent with the forward pass).
    p = 3
    input_length = 8
    output_length = 4

    key = jax.random.PRNGKey(0)
    k_w, k_x1, k_x2 = jax.random.split(key, 3)

    # nn.init.uniform_(weight) -> U[0,1); nn.init.zeros_(c)
    weight = jax.random.uniform(k_w, (p, 1), dtype=jnp.float32)
    c = jnp.zeros((1,), dtype=jnp.float32)

    # Case 1: small N*C -> flattened lane layout path.
    B, N, C = 2, 4, 3
    hist1 = jax.random.normal(k_x1, (B, input_length, N, C), dtype=jnp.float32)
    pred1 = jax.block_until_ready(
        autoregressive_forward(hist1, weight, c, p=p, output_length=output_length))
    ref1 = _reference(hist1, weight, c, p, output_length)
    assert pred1.shape == (B, output_length, N, C)
    assert jnp.allclose(pred1, ref1, atol=1e-5, rtol=1e-4), "mismatch (flat path)"

    # Case 2: lane-dense N*C with a ragged last lane block -> transpose-free
    # B-major path (exercises masked partial blocks).
    B2, N2, C2 = 2, 17, 9                    # N*C = 153 -> 128-lane block + tail
    hist2 = jax.random.normal(k_x2, (B2, input_length, N2, C2), dtype=jnp.float32)
    pred2 = jax.block_until_ready(
        autoregressive_forward(hist2, weight, c, p=p, output_length=output_length))
    ref2 = _reference(hist2, weight, c, p, output_length)
    assert pred2.shape == (B2, output_length, N2, C2)
    assert jnp.allclose(pred2, ref2, atol=1e-5, rtol=1e-4), "mismatch (B-major path)"

    print("KERNEL_OK")
</pallas_src>

<mosaic_0001>
module attributes {stable_mosaic.version = 11 : i64} {
  func.func @_ar_kernel(%arg0: i32, %arg1: memref<4x3xf32, #tpu.memory_space<vmem>>, %arg2: memref<4x1xf32, #tpu.memory_space<vmem>>, %arg3: memref<3x24xf32, #tpu.memory_space<vmem>>, %arg4: memref<4x24xf32, #tpu.memory_space<vmem>>) attributes {dimension_semantics = [#tpu.dimension_semantics<parallel>], iteration_bounds = array<i64: 1>, scalar_prefetch = 0 : i64, scratch_operands = 0 : i64, tpu.core_type = #tpu.core_type<tc>, window_params = [{pipeline_mode = #tpu.pipeline_mode<synchronous>, transform_indices = @transform_0, window_bounds = array<i64: 4, 3>}, {pipeline_mode = #tpu.pipeline_mode<synchronous>, transform_indices = @transform_1, window_bounds = array<i64: 4, 1>}, {transform_indices = @transform_2, window_bounds = array<i64: 3, 24>}, {transform_indices = @transform_3, window_bounds = array<i64: 4, 24>}]} {
    %c0 = arith.constant 0 : index
    %c0_0 = arith.constant 0 : index
    %0 = vector.load %arg1[%c0, %c0_0] : memref<4x3xf32, #tpu.memory_space<vmem>>, vector<4x3xf32>
    %c0_1 = arith.constant 0 : index
    %c0_2 = arith.constant 0 : index
    %1 = vector.load %arg3[%c0_1, %c0_2] : memref<3x24xf32, #tpu.memory_space<vmem>>, vector<3x24xf32>
    %c0_3 = arith.constant 0 : index
    %c0_4 = arith.constant 0 : index
    %2 = vector.load %arg2[%c0_3, %c0_4] : memref<4x1xf32, #tpu.memory_space<vmem>>, vector<4x1xf32>
    %3 = vector.shape_cast %2 : vector<4x1xf32> to vector<4x1xf32>
    %4 = vector.broadcast %3 : vector<4x1xf32> to vector<4x24xf32>
    %5 = vector.extract_strided_slice %0 {offsets = [0, 0], sizes = [4, 1], strides = [1, 1]} : vector<4x3xf32> to vector<4x1xf32>
    %6 = vector.extract_strided_slice %1 {offsets = [0, 0], sizes = [1, 24], strides = [1, 1]} : vector<3x24xf32> to vector<1x24xf32>
    %7 = vector.broadcast %5 : vector<4x1xf32> to vector<4x24xf32>
    %8 = vector.broadcast %6 : vector<1x24xf32> to vector<4x24xf32>
    %9 = arith.mulf %7, %8 : vector<4x24xf32>
    %10 = arith.addf %4, %9 : vector<4x24xf32>
    %11 = vector.extract_strided_slice %0 {offsets = [0, 1], sizes = [4, 1], strides = [1, 1]} : vector<4x3xf32> to vector<4x1xf32>
    %12 = vector.extract_strided_slice %1 {offsets = [1, 0], sizes = [1, 24], strides = [1, 1]} : vector<3x24xf32> to vector<1x24xf32>
    %13 = vector.broadcast %11 : vector<4x1xf32> to vector<4x24xf32>
    %14 = vector.broadcast %12 : vector<1x24xf32> to vector<4x24xf32>
    %15 = arith.mulf %13, %14 : vector<4x24xf32>
    %16 = arith.addf %10, %15 : vector<4x24xf32>
    %17 = vector.extract_strided_slice %0 {offsets = [0, 2], sizes = [4, 1], strides = [1, 1]} : vector<4x3xf32> to vector<4x1xf32>
    %18 = vector.extract_strided_slice %1 {offsets = [2, 0], sizes = [1, 24], strides = [1, 1]} : vector<3x24xf32> to vector<1x24xf32>
    %19 = vector.broadcast %17 : vector<4x1xf32> to vector<4x24xf32>
    %20 = vector.broadcast %18 : vector<1x24xf32> to vector<4x24xf32>
    %21 = arith.mulf %19, %20 : vector<4x24xf32>
    %22 = arith.addf %16, %21 : vector<4x24xf32>
    %c0_5 = arith.constant 0 : index
    %c0_6 = arith.constant 0 : index
    %23 = vector.load %arg4[%c0_5, %c0_6] : memref<4x24xf32, #tpu.memory_space<vmem>>, vector<4x24xf32>
    tpu.vector_store %arg4[%c0_5, %c0_6], %22 {strides = array<i32>} : memref<4x24xf32, #tpu.memory_space<vmem>>, vector<4x24xf32>,
    return
  }
  func.func @transform_0(%arg0: i32) -> (i32, i32) {
    %c0_i32 = arith.constant 0 : i32
    %c0_i32_0 = arith.constant 0 : i32
    %c0_i32_1 = arith.constant 0 : i32
    return %c0_i32, %c0_i32_0 : i32, i32
  }
  func.func @transform_1(%arg0: i32) -> (i32, i32) {
    %c0_i32 = arith.constant 0 : i32
    %c0_i32_0 = arith.constant 0 : i32
    %c0_i32_1 = arith.constant 0 : i32
    return %c0_i32, %c0_i32_0 : i32, i32
  }
  func.func @transform_2(%arg0: i32) -> (i32, i32) {
    %c0_i32 = arith.constant 0 : i32
    %c0_i32_0 = arith.constant 0 : i32
    return %c0_i32, %arg0 : i32, i32
  }
  func.func @transform_3(%arg0: i32) -> (i32, i32) {
    %c0_i32 = arith.constant 0 : i32
    %c0_i32_0 = arith.constant 0 : i32
    return %c0_i32, %arg0 : i32, i32
  }
}

</mosaic_0001>

<llo_original>
// kernel: custom-call
$region0: #{custom-call}
  %s0 = inlined_call_operand.vmem [shape: f32[4,3], index: 0, kind: output, shape index: {}]

// kernel: custom-call.1
$region0: #{custom-call.1}
  %s0 = inlined_call_operand.vmem [shape: f32[4], index: 0, kind: output, shape index: {}]

// kernel: autoregressive_forward.1
$region0: #{autoregressive_forward.1}
  #allocation0 [shape = 'u32[]', space=smem, size = 0x4, offset = 0x4, fixed_abs, tag = 'smem constant byte address 0x4 - core index']
  #allocation1 [shape = 'u32[144,128]{1,0:T(1,128)}', space=vmem, size = 0x12000, scoped, tag = 'internal scratch']
  %s0 = inlined_call_operand.vmem [shape: f32[4,3], index: 0, kind: input, shape index: {}]
  %s1 = inlined_call_operand.vmem [shape: f32[4,1], index: 1, kind: input, shape index: {}]
  %s2 = inlined_call_operand.vmem [shape: f32[3,24], index: 2, kind: input, shape index: {}]
  %s3 = inlined_call_operand.vmem [shape: f32[4,24], index: 3, kind: output, shape index: {}]
  %s4 = sld [smem:[#allocation0]]
  $region22: #{autoregressive_forward.1} parent=0
    _
  %s6 = ssub.s32 1, %s4
  %s7 = scalar_select 0, %s6, %s4
  // Predicated region
  $region2: #{autoregressive_forward.1} parent=0 // pred_check
    _
  $region3: #{autoregressive_forward.1} parent=0 // pred_check_branch
    %9 = sbr.rel (0) target = $region5
  $region4: #{autoregressive_forward.1} parent=0 // pred_region
    _
  $region5: #{autoregressive_forward.1} parent=0 // pred_fallthru
    _
  // Predicated region
  $region6: #{autoregressive_forward.1} parent=0 // pred_check
    _
  $region7: #{autoregressive_forward.1} parent=0 // pred_check_branch
    %11 = sbr.rel (0) target = $region9
  $region8: #{autoregressive_forward.1} parent=0 // pred_region
    _
  $region9: #{autoregressive_forward.1} parent=0 // pred_fallthru
    _
  // Predicated region
  $region10: #{autoregressive_forward.1} parent=0 // pred_check
    _
  $region11: #{autoregressive_forward.1} parent=0 // pred_check_branch
    %13 = sbr.rel (0) target = $region13
  $region12: #{autoregressive_forward.1} parent=0 // pred_region
    _
  $region13: #{autoregressive_forward.1} parent=0 // pred_fallthru
    _
  %v14 = vld [vmem:[%s0] sm:$0xf]
  %v15 = vld [vmem:[%s2] sm:$0x7]
  %v16 = vld [vmem:[%s1] sm:$0xf]
  %18 = vset.pattern.permute.xlu0 0
  %19 = vperm.xlu0 %18, %v16
  %v20 = vpop.permute.xlu0 %19
  %23 = vset.pattern.permute.xlu0 0
  %24 = vperm.xlu0 %23, %v14
  %v25 = vpop.permute.xlu0 %24
  %v27 = vlaneseq
  %v28 = vshrl.u32 %v27, 7
  %v29 = vsub.s32 0, %v28
  %v30 = vrot.slane %v15, %v29
  %v31 = vmul.f32 %v25, %v30
  %v32 = vadd.f32 %v20, %v31
  %33 = vset.pattern.permute.xlu0 1
  %34 = vperm.xlu0 %33, %v14
  %v35 = vpop.permute.xlu0 %34
  %v37 = vlaneseq
  %v38 = vshrl.u32 %v37, 7
  %v39 = vsub.s32 1, %v38
  %v40 = vrot.slane %v15, %v39
  %v41 = vmul.f32 %v35, %v40
  %v42 = vadd.f32 %v32, %v41
  %43 = vset.pattern.permute.xlu0 2
  %44 = vperm.xlu0 %43, %v14
  %v45 = vpop.permute.xlu0 %44
  %v47 = vlaneseq
  %v48 = vshrl.u32 %v47, 7
  %v49 = vsub.s32 2, %v48
  %v50 = vrot.slane %v15, %v49
  %v51 = vmul.f32 %v45, %v50
  %v52 = vadd.f32 %v42, %v51
  %vm53 = vcmask 191488
  %54 = vst.msk [vmem:[%s3] sm:$0xf] %vm53, %v52
  // Predicated region
  $region14: #{autoregressive_forward.1} parent=0 // pred_check
    _
  $region15: #{autoregressive_forward.1} parent=0 // pred_check_branch
    %56 = sbr.rel (0) target = $region17
  $region16: #{autoregressive_forward.1} parent=0 // pred_region
    _
  $region17: #{autoregressive_forward.1} parent=0 // pred_fallthru
    _
  // Predicated region
  $region18: #{autoregressive_forward.1} parent=0 // pred_check
    _
  $region19: #{autoregressive_forward.1} parent=0 // pred_check_branch
    %58 = sbr.rel (0) target = $region21
  $region20: #{autoregressive_forward.1} parent=0 // pred_region
    _
  $region21: #{autoregressive_forward.1} parent=0 // pred_fallthru
    _

</llo_original>
